<compile_context>
chip_gen: v7x
topology: tpu7x:2x2x1
jax: 0.10.0
libtpu: 0.0.40
codegen_flags: <defaults>
</compile_context>

<pallas_src>
import jax
import jax.numpy as jnp
from jax.experimental import pallas as pl
from jax.experimental.pallas import tpu as pltpu


def ca_block_kernel(x_ref, w1_ref, bias_ref, wh_ref, ww_ref,
                    pool_ref, eh_ref, ew_ref, o_ref):
    """One grid step: bt batch images, flattened to a lane-dense (bt*c, h*w) slab."""
    x = x_ref[...]                                                           # (bt*c, hw)

    # Coordinate pooling (mean over W and mean over H) as one MXU matmul
    # against a constant (hw, h+w) pooling matrix -> no cross-lane jnp.mean.
    pooled = jnp.dot(x, pool_ref[...], preferred_element_type=jnp.float32)   # (bt*c, h+w)

    # conv1 (1x1, no bias) on the concatenated [pool_h ; pool_w] axis, with
    # the BatchNorm scale folded into the weights.  Block-diagonal over the
    # bt batch images so it stays a plain 2-D matmul.
    t = jnp.dot(w1_ref[...], pooled, preferred_element_type=jnp.float32)     # (bt*cr, h+w)
    t = t + bias_ref[...]                                                    # BN bias (lane bcast)

    # Hardswish: x * relu6(x + 3) / 6
    t = t * jnp.clip(t + 3.0, 0.0, 6.0) * (1.0 / 6.0)

    # F_h / F_w (1x1 convs) + sigmoid, computed over the full (h+w) axis; the
    # 0/1 expansion matmuls below pick only the relevant half of each.
    a_h = jax.nn.sigmoid(
        jnp.dot(wh_ref[...], t, preferred_element_type=jnp.float32))         # (bt*c, h+w)
    a_w = jax.nn.sigmoid(
        jnp.dot(ww_ref[...], t, preferred_element_type=jnp.float32))         # (bt*c, h+w)

    # Broadcast A_h over W and A_w over H via constant expansion matmuls.
    a_h_full = jnp.dot(a_h, eh_ref[...], preferred_element_type=jnp.float32)  # (bt*c, hw)
    a_w_full = jnp.dot(a_w, ew_ref[...], preferred_element_type=jnp.float32)  # (bt*c, hw)

    o_ref[...] = (x * a_h_full * a_w_full).astype(o_ref.dtype)


def _choose_bt(b, per_batch_bytes, max_block_bytes=2 << 20):
    """Batch-tile size: amortize per-step overhead but keep >= 2 grid steps."""
    bt = int(max(1, min(b, max_block_bytes // max(per_batch_bytes, 1))))
    while bt > 1 and (b // bt) < 2:
        bt -= 1
    while b % bt != 0:
        bt -= 1
    return bt


def ca_block(x, w1, wh, ww, bn_scale, bn_bias, *, bt=None):
    b, c, h, w = x.shape
    cr = w1.shape[0]
    hw = h * w
    s = h + w
    f32 = jnp.float32

    if bt is None:
        bt = _choose_bt(b, c * hw * x.dtype.itemsize)
    assert b % bt == 0

    # ---- constant pooling / expansion matrices (built once in the wrapper) ----
    rows = jnp.arange(hw) // w          # H index of each flattened position
    cols = jnp.arange(hw) % w           # W index of each flattened position
    p_h = (rows[:, None] == jnp.arange(h)[None, :]).astype(f32) / w          # (hw, h)
    p_w = (cols[:, None] == jnp.arange(w)[None, :]).astype(f32) / h          # (hw, w)
    pool_mat = jnp.concatenate([p_h, p_w], axis=1)                           # (hw, h+w)
    e_h = jnp.concatenate(
        [(jnp.arange(h)[:, None] == rows[None, :]).astype(f32),
         jnp.zeros((w, hw), f32)], axis=0)                                   # (h+w, hw)
    e_w = jnp.concatenate(
        [jnp.zeros((h, hw), f32),
         (jnp.arange(w)[:, None] == cols[None, :]).astype(f32)], axis=0)     # (h+w, hw)

    # ---- fold BN scale into conv1; block-diagonalize weights over bt batches ----
    w1_scaled = (bn_scale.reshape(cr, 1) * w1).astype(f32)                   # (cr, c)
    eye_bt = jnp.eye(bt, dtype=f32)
    w1_blk = jnp.kron(eye_bt, w1_scaled)                                     # (bt*cr, bt*c)
    wh_blk = jnp.kron(eye_bt, wh.astype(f32))                                # (bt*c, bt*cr)
    ww_blk = jnp.kron(eye_bt, ww.astype(f32))                                # (bt*c, bt*cr)
    bias_blk = jnp.tile(bn_bias.reshape(cr, 1), (bt, 1)).astype(f32)         # (bt*cr, 1)

    x2 = x.reshape(b * c, hw)                                                # lane-dense layout

    def const_spec(shape):
        return pl.BlockSpec(shape, lambda i: (0, 0))

    out2 = pl.pallas_call(
        ca_block_kernel,
        out_shape=jax.ShapeDtypeStruct((b * c, hw), x.dtype),
        grid_spec=pltpu.PrefetchScalarGridSpec(
            num_scalar_prefetch=0,
            grid=(b // bt,),
            in_specs=[
                pl.BlockSpec((bt * c, hw), lambda i: (i, 0)),
                const_spec((bt * cr, bt * c)),
                const_spec((bt * cr, 1)),
                const_spec((bt * c, bt * cr)),
                const_spec((bt * c, bt * cr)),
                const_spec((hw, s)),
                const_spec((s, hw)),
                const_spec((s, hw)),
            ],
            out_specs=pl.BlockSpec((bt * c, hw), lambda i: (i, 0)),
        ),
        compiler_params=pltpu.CompilerParams(
            dimension_semantics=("parallel",),
            vmem_limit_bytes=32 * 1024 * 1024,
        ),
    )(x2, w1_blk, bias_blk, wh_blk, ww_blk, pool_mat, e_h, e_w)

    return out2.reshape(b, c, h, w)


def ca_block_ref(x, w1, wh, ww, bn_scale, bn_bias):
    """Pure-JAX reference matching the PyTorch forward (inference BN)."""
    x_h = jnp.mean(x, axis=3)                               # (b, c, h)
    x_w = jnp.mean(x, axis=2)                               # (b, c, w)
    x_cat = jnp.concatenate([x_h, x_w], axis=2)             # (b, c, h+w)
    t = jnp.einsum("rc,bcs->brs", w1, x_cat)                # (b, cr, h+w)
    t = t * bn_scale[None, :, :] + bn_bias[None, :, :]
    t = t * jnp.clip(t + 3.0, 0.0, 6.0) / 6.0               # hardswish
    h = x.shape[2]
    t_h, t_w = t[:, :, :h], t[:, :, h:]
    a_h = jax.nn.sigmoid(jnp.einsum("cr,brh->bch", wh, t_h))  # (b, c, h)
    a_w = jax.nn.sigmoid(jnp.einsum("cr,brw->bcw", ww, t_w))  # (b, c, w)
    return x * a_h[:, :, :, None] * a_w[:, :, None, :]


if __name__ == "__main__":
    B, C, H, W = 2, 64, 16, 16
    REDUCTION = 16
    CR = C // REDUCTION

    key = jax.random.PRNGKey(0)
    kx, k1, k2, k3 = jax.random.split(key, 4)

    x = jax.random.normal(kx, (B, C, H, W), dtype=jnp.float32)
    # 1x1 conv weights => plain channel-mixing matrices
    w1 = 0.2 * jax.random.normal(k1, (CR, C), dtype=jnp.float32)   # conv1
    wh = 0.2 * jax.random.normal(k2, (C, CR), dtype=jnp.float32)   # F_h
    ww = 0.2 * jax.random.normal(k3, (C, CR), dtype=jnp.float32)   # F_w

    # BatchNorm2d params (deterministic, non-trivial), folded to scale/bias.
    eps = 1e-5
    gamma = 1.0 + 0.1 * jnp.arange(CR, dtype=jnp.float32)
    beta = 0.05 * jnp.arange(CR, dtype=jnp.float32)
    running_mean = 0.01 * jnp.arange(CR, dtype=jnp.float32)
    running_var = 1.0 + 0.02 * jnp.arange(CR, dtype=jnp.float32)
    bn_scale = (gamma / jnp.sqrt(running_var + eps)).reshape(CR, 1)
    bn_bias = (beta - running_mean * gamma / jnp.sqrt(running_var + eps)).reshape(CR, 1)

    out = ca_block(x, w1, wh, ww, bn_scale, bn_bias)
    out = jax.block_until_ready(out)

    ref = ca_block_ref(x, w1, wh, ww, bn_scale, bn_bias)
    assert out.shape == (B, C, H, W)
    assert jnp.allclose(out, ref, atol=1e-4, rtol=1e-4), "mismatch vs JAX reference"

    print("KERNEL_OK")
</pallas_src>

<mosaic_0001>
module attributes {stable_mosaic.version = 11 : i64} {
  func.func @ca_block_kernel(%arg0: i32, %arg1: memref<64x256xf32, #tpu.memory_space<vmem>>, %arg2: memref<4x64xf32, #tpu.memory_space<vmem>>, %arg3: memref<4x1xf32, #tpu.memory_space<vmem>>, %arg4: memref<64x4xf32, #tpu.memory_space<vmem>>, %arg5: memref<64x4xf32, #tpu.memory_space<vmem>>, %arg6: memref<256x32xf32, #tpu.memory_space<vmem>>, %arg7: memref<32x256xf32, #tpu.memory_space<vmem>>, %arg8: memref<32x256xf32, #tpu.memory_space<vmem>>, %arg9: memref<64x256xf32, #tpu.memory_space<vmem>>) attributes {dimension_semantics = [#tpu.dimension_semantics<parallel>], iteration_bounds = array<i64: 2>, scalar_prefetch = 0 : i64, scratch_operands = 0 : i64, tpu.core_type = #tpu.core_type<tc>, window_params = [{transform_indices = @transform_0, window_bounds = array<i64: 64, 256>}, {pipeline_mode = #tpu.pipeline_mode<synchronous>, transform_indices = @transform_1, window_bounds = array<i64: 4, 64>}, {pipeline_mode = #tpu.pipeline_mode<synchronous>, transform_indices = @transform_2, window_bounds = array<i64: 4, 1>}, {pipeline_mode = #tpu.pipeline_mode<synchronous>, transform_indices = @transform_3, window_bounds = array<i64: 64, 4>}, {pipeline_mode = #tpu.pipeline_mode<synchronous>, transform_indices = @transform_4, window_bounds = array<i64: 64, 4>}, {pipeline_mode = #tpu.pipeline_mode<synchronous>, transform_indices = @transform_5, window_bounds = array<i64: 256, 32>}, {pipeline_mode = #tpu.pipeline_mode<synchronous>, transform_indices = @transform_6, window_bounds = array<i64: 32, 256>}, {pipeline_mode = #tpu.pipeline_mode<synchronous>, transform_indices = @transform_7, window_bounds = array<i64: 32, 256>}, {transform_indices = @transform_8, window_bounds = array<i64: 64, 256>}]} {
    %c0 = arith.constant 0 : index
    %c0_0 = arith.constant 0 : index
    %0 = vector.load %arg1[%c0, %c0_0] : memref<64x256xf32, #tpu.memory_space<vmem>>, vector<64x256xf32>
    %c0_1 = arith.constant 0 : index
    %c0_2 = arith.constant 0 : index
    %1 = vector.load %arg6[%c0_1, %c0_2] : memref<256x32xf32, #tpu.memory_space<vmem>>, vector<256x32xf32>
    %cst = arith.constant dense<0.000000e+00> : vector<64x32xf32>
    %2 = tpu.matmul %0, %1, %cst {dimension_numbers = #tpu.dot_dimension_numbers<[1], [0], [0], [1], [0, 0, 1, 1], [], []>} : vector<64x256xf32>, vector<256x32xf32>, vector<64x32xf32> -> vector<64x32xf32>
    %c0_3 = arith.constant 0 : index
    %c0_4 = arith.constant 0 : index
    %3 = vector.load %arg2[%c0_3, %c0_4] : memref<4x64xf32, #tpu.memory_space<vmem>>, vector<4x64xf32>
    %cst_5 = arith.constant dense<0.000000e+00> : vector<4x32xf32>
    %4 = tpu.matmul %3, %2, %cst_5 {dimension_numbers = #tpu.dot_dimension_numbers<[1], [0], [0], [1], [0, 0, 1, 1], [], []>} : vector<4x64xf32>, vector<64x32xf32>, vector<4x32xf32> -> vector<4x32xf32>
    %c0_6 = arith.constant 0 : index
    %c0_7 = arith.constant 0 : index
    %5 = vector.load %arg3[%c0_6, %c0_7] : memref<4x1xf32, #tpu.memory_space<vmem>>, vector<4x1xf32>
    %6 = vector.broadcast %5 : vector<4x1xf32> to vector<4x32xf32>
    %7 = arith.addf %4, %6 : vector<4x32xf32>
    %cst_8 = arith.constant 3.000000e+00 : f32
    %8 = vector.broadcast %cst_8 : f32 to vector<4x32xf32>
    %9 = arith.addf %7, %8 : vector<4x32xf32>
    %cst_9 = arith.constant 0.000000e+00 : f32
    %cst_10 = arith.constant 6.000000e+00 : f32
    %10 = vector.broadcast %cst_9 : f32 to vector<4x32xf32>
    %11 = arith.maximumf %10, %9 : vector<4x32xf32>
    %12 = vector.broadcast %cst_10 : f32 to vector<4x32xf32>
    %13 = arith.minimumf %12, %11 : vector<4x32xf32>
    %14 = arith.mulf %7, %13 : vector<4x32xf32>
    %cst_11 = arith.constant 0.166666672 : f32
    %15 = vector.broadcast %cst_11 : f32 to vector<4x32xf32>
    %16 = arith.mulf %14, %15 : vector<4x32xf32>
    %c0_12 = arith.constant 0 : index
    %c0_13 = arith.constant 0 : index
    %17 = vector.load %arg4[%c0_12, %c0_13] : memref<64x4xf32, #tpu.memory_space<vmem>>, vector<64x4xf32>
    %cst_14 = arith.constant dense<0.000000e+00> : vector<64x32xf32>
    %18 = tpu.matmul %17, %16, %cst_14 {dimension_numbers = #tpu.dot_dimension_numbers<[1], [0], [0], [1], [0, 0, 1, 1], [], []>} : vector<64x4xf32>, vector<4x32xf32>, vector<64x32xf32> -> vector<64x32xf32>
    %19 = arith.negf %18 : vector<64x32xf32>
    %20 = math.exp %19 : vector<64x32xf32>
    %cst_15 = arith.constant 1.000000e+00 : f32
    %21 = vector.broadcast %cst_15 : f32 to vector<64x32xf32>
    %22 = arith.addf %21, %20 : vector<64x32xf32>
    %23 = arith.divf %21, %22 : vector<64x32xf32>
    %c0_16 = arith.constant 0 : index
    %c0_17 = arith.constant 0 : index
    %24 = vector.load %arg5[%c0_16, %c0_17] : memref<64x4xf32, #tpu.memory_space<vmem>>, vector<64x4xf32>
    %cst_18 = arith.constant dense<0.000000e+00> : vector<64x32xf32>
    %25 = tpu.matmul %24, %16, %cst_18 {dimension_numbers = #tpu.dot_dimension_numbers<[1], [0], [0], [1], [0, 0, 1, 1], [], []>} : vector<64x4xf32>, vector<4x32xf32>, vector<64x32xf32> -> vector<64x32xf32>
    %26 = arith.negf %25 : vector<64x32xf32>
    %27 = math.exp %26 : vector<64x32xf32>
    %cst_19 = arith.constant 1.000000e+00 : f32
    %28 = vector.broadcast %cst_19 : f32 to vector<64x32xf32>
    %29 = arith.addf %28, %27 : vector<64x32xf32>
    %30 = arith.divf %28, %29 : vector<64x32xf32>
    %c0_20 = arith.constant 0 : index
    %c0_21 = arith.constant 0 : index
    %31 = vector.load %arg7[%c0_20, %c0_21] : memref<32x256xf32, #tpu.memory_space<vmem>>, vector<32x256xf32>
    %cst_22 = arith.constant dense<0.000000e+00> : vector<64x256xf32>
    %32 = tpu.matmul %23, %31, %cst_22 {dimension_numbers = #tpu.dot_dimension_numbers<[1], [0], [0], [1], [0, 0, 1, 1], [], []>} : vector<64x32xf32>, vector<32x256xf32>, vector<64x256xf32> -> vector<64x256xf32>
    %c0_23 = arith.constant 0 : index
    %c0_24 = arith.constant 0 : index
    %33 = vector.load %arg8[%c0_23, %c0_24] : memref<32x256xf32, #tpu.memory_space<vmem>>, vector<32x256xf32>
    %cst_25 = arith.constant dense<0.000000e+00> : vector<64x256xf32>
    %34 = tpu.matmul %30, %33, %cst_25 {dimension_numbers = #tpu.dot_dimension_numbers<[1], [0], [0], [1], [0, 0, 1, 1], [], []>} : vector<64x32xf32>, vector<32x256xf32>, vector<64x256xf32> -> vector<64x256xf32>
    %35 = arith.mulf %0, %32 : vector<64x256xf32>
    %36 = arith.mulf %35, %34 : vector<64x256xf32>
    %c0_26 = arith.constant 0 : index
    %c0_27 = arith.constant 0 : index
    %37 = vector.load %arg9[%c0_26, %c0_27] : memref<64x256xf32, #tpu.memory_space<vmem>>, vector<64x256xf32>
    tpu.vector_store %arg9[%c0_26, %c0_27], %36 {strides = array<i32>} : memref<64x256xf32, #tpu.memory_space<vmem>>, vector<64x256xf32>,
    return
  }
  func.func @transform_0(%arg0: i32) -> (i32, i32) {
    %c0_i32 = arith.constant 0 : i32
    %c0_i32_0 = arith.constant 0 : i32
    return %arg0, %c0_i32 : i32, i32
  }
  func.func @transform_1(%arg0: i32) -> (i32, i32) {
    %c0_i32 = arith.constant 0 : i32
    %c0_i32_0 = arith.constant 0 : i32
    %c0_i32_1 = arith.constant 0 : i32
    return %c0_i32, %c0_i32_0 : i32, i32
  }
  func.func @transform_2(%arg0: i32) -> (i32, i32) {
    %c0_i32 = arith.constant 0 : i32
    %c0_i32_0 = arith.constant 0 : i32
    %c0_i32_1 = arith.constant 0 : i32
    return %c0_i32, %c0_i32_0 : i32, i32
  }
  func.func @transform_3(%arg0: i32) -> (i32, i32) {
    %c0_i32 = arith.constant 0 : i32
    %c0_i32_0 = arith.constant 0 : i32
    %c0_i32_1 = arith.constant 0 : i32
    return %c0_i32, %c0_i32_0 : i32, i32
  }
  func.func @transform_4(%arg0: i32) -> (i32, i32) {
    %c0_i32 = arith.constant 0 : i32
    %c0_i32_0 = arith.constant 0 : i32
    %c0_i32_1 = arith.constant 0 : i32
    return %c0_i32, %c0_i32_0 : i32, i32
  }
  func.func @transform_5(%arg0: i32) -> (i32, i32) {
    %c0_i32 = arith.constant 0 : i32
    %c0_i32_0 = arith.constant 0 : i32
    %c0_i32_1 = arith.constant 0 : i32
    return %c0_i32, %c0_i32_0 : i32, i32
  }
  func.func @transform_6(%arg0: i32) -> (i32, i32) {
    %c0_i32 = arith.constant 0 : i32
    %c0_i32_0 = arith.constant 0 : i32
    %c0_i32_1 = arith.constant 0 : i32
    return %c0_i32, %c0_i32_0 : i32, i32
  }
  func.func @transform_7(%arg0: i32) -> (i32, i32) {
    %c0_i32 = arith.constant 0 : i32
    %c0_i32_0 = arith.constant 0 : i32
    %c0_i32_1 = arith.constant 0 : i32
    return %c0_i32, %c0_i32_0 : i32, i32
  }
  func.func @transform_8(%arg0: i32) -> (i32, i32) {
    %c0_i32 = arith.constant 0 : i32
    %c0_i32_0 = arith.constant 0 : i32
    return %arg0, %c0_i32 : i32, i32
  }
}

</mosaic_0001>

<llo_original>
// kernel: tpu_custom_call.1
$region0: #{tpu_custom_call.1}
  #allocation0 [shape = 'u32[]', space=smem, size = 0x4, offset = 0x4, fixed_abs, tag = 'smem constant byte address 0x4 - core index']
  #allocation1 [shape = 'u32[144,128]{1,0:T(1,128)}', space=vmem, size = 0x12000, scoped, tag = 'internal scratch']
  %s0 = inlined_call_operand.vmem [shape: f32[128,256], index: 0, kind: input, shape index: {}]
  %s1 = inlined_call_operand.vmem [shape: f32[4,64], index: 1, kind: input, shape index: {}]
  %s2 = inlined_call_operand.vmem [shape: f32[4,1], index: 2, kind: input, shape index: {}]
  %s3 = inlined_call_operand.vmem [shape: f32[64,4], index: 3, kind: input, shape index: {}]
  %s4 = inlined_call_operand.vmem [shape: f32[64,4], index: 4, kind: input, shape index: {}]
  %s5 = inlined_call_operand.vmem [shape: f32[256,32], index: 5, kind: input, shape index: {}]
  %s6 = inlined_call_operand.vmem [shape: f32[32,256], index: 6, kind: input, shape index: {}]
  %s7 = inlined_call_operand.vmem [shape: f32[32,256], index: 7, kind: input, shape index: {}]
  %s8 = inlined_call_operand.hbm [shape: f32[128,256], index: 8, kind: output, shape index: {}]
  %s9 = sld [smem:[#allocation0]]
  $region65: #{tpu_custom_call.1} parent=0
    _
  %s11 = ssub.s32 1, %s9
  %s12 = scalar_select 0, %s11, %s9
  $region1: #{tpu_custom_call.1} parent=0
    #allocation2 [shape = 'u8[131072]{0}', space=vmem, size = 0x20000, scoped, tag = 'output window, operand 0']
    #allocation3 [shape = 's32[2]{0}', space=sflag, size = 0x8, scoped, tag = 'scoped memory for tpu_custom_call.1']
    %13 = vsyncpa [#allocation3], 0
    %s14 = scalar_lea.sflag [#allocation3], 1
    %15 = vsyncpa %s14, 0
    loop: start=0, step=1, limit=4
    $region2: #{tpu_custom_call.1} parent=1 // loop_pre_header
      _
    $region3: #{tpu_custom_call.1} parent=1 // loop_header
      %s17 = sphi 0, %s21
      %p18 = scmp.ge.s32.totalorder %s17, 4
      %s27 = sphi 0, %s29
      %s30 = sphi 0, %s27
      %s31 = sphi 0, %s30
      %s47 = sphi 0, %s31
      %s51 = sphi 0, %s51
      %s53 = sphi 0, %s51
      %s54 = sphi 0, %s53
      %s68 = sphi 0, %s54
      %s72 = sphi 0, %s72
      %s74 = sphi 0, %s72
      %s75 = sphi 0, %s74
      %s89 = sphi 0, %s75
      %s93 = sphi 0, %s93
      %s95 = sphi 0, %s93
      %s96 = sphi 0, %s95
      %s110 = sphi 0, %s96
      %s114 = sphi 0, %s114
      %s116 = sphi 0, %s114
      %s117 = sphi 0, %s116
      %s131 = sphi 0, %s117
      %s135 = sphi 0, %s135
      %s137 = sphi 0, %s135
      %s138 = sphi 0, %s137
      %s152 = sphi 0, %s138
      %s156 = sphi 0, %s156
      %s158 = sphi 0, %s156
      %s159 = sphi 0, %s158
      %s173 = sphi 0, %s159
      %s177 = sphi 0, %s177
      %s179 = sphi 0, %s177
      %s180 = sphi 0, %s179
      %s194 = sphi 0, %s180
      %s200 = sphi 0, %s202
      %s203 = sphi 0, %s200
      %s204 = sphi 0, %s203
      %s220 = sphi 0, %s204
    $region4: #{tpu_custom_call.1} parent=1 // loop_header_branch
      %20 = sbr.rel (%p18) target = $region8
    $region5: #{tpu_custom_call.1} parent=1 // loop_body
      %s22 = ssub.s32 %s17, 1
      %s23 = ssub.s32 %s17, 2
      %s24 = sadd.s32 %s17, 1
      %s25 = ssub.s32 %s17, %s24
      %p26 = scmp.eq.s32.totalorder %s25, 0
      %s28 = sadd.s32 %s27, 1
      %s29 = scalar_select %p26, %s27, %s28
      %p32 = pneg %p26
      %p33 = scmp.eq.s32.totalorder %s17, 1
      %p34 = por %p32, %p33
      %p35 = scmp.ne.s32.totalorder %s27, %s30
      %p36 = scmp.eq.s32.totalorder %s17, 0
      %p37 = por %p35, %p36
      %p38 = scmp.ne.s32.totalorder %s27, %s30
      %p39 = scmp.eq.s32.totalorder %s22, 1
      %p40 = por %p38, %p39
      %p41 = scmp.ne.s32.totalorder %s30, %s31
      %p42 = scmp.eq.s32.totalorder %s22, 0
      %p43 = por %p41, %p42
      %p44 = scmp.ne.s32.totalorder %s30, %s31
      %p45 = scmp.eq.s32.totalorder %s23, 1
      %p46 = por %p44, %p45
      %p48 = scmp.ne.s32.totalorder %s31, %s47
      %p49 = scmp.eq.s32.totalorder %s23, 0
      %p50 = por %p48, %p49
      %s52 = sadd.s32 %s51, 1
      %p55 = scmp.eq.s32.totalorder %s17, 1
      %p56 = scmp.ne.s32.totalorder %s51, %s53
      %p57 = scmp.eq.s32.totalorder %s17, 0
      %p58 = por %p56, %p57
      %p59 = scmp.ne.s32.totalorder %s51, %s53
      %p60 = scmp.eq.s32.totalorder %s22, 1
      %p61 = por %p59, %p60
      %p62 = scmp.ne.s32.totalorder %s53, %s54
      %p63 = scmp.eq.s32.totalorder %s22, 0
      %p64 = por %p62, %p63
      %p65 = scmp.ne.s32.totalorder %s53, %s54
      %p66 = scmp.eq.s32.totalorder %s23, 1
      %p67 = por %p65, %p66
      %p69 = scmp.ne.s32.totalorder %s54, %s68
      %p70 = scmp.eq.s32.totalorder %s23, 0
      %p71 = por %p69, %p70
      %s73 = sadd.s32 %s72, 1
      %p76 = scmp.eq.s32.totalorder %s17, 1
      %p77 = scmp.ne.s32.totalorder %s72, %s74
      %p78 = scmp.eq.s32.totalorder %s17, 0
      %p79 = por %p77, %p78
      %p80 = scmp.ne.s32.totalorder %s72, %s74
      %p81 = scmp.eq.s32.totalorder %s22, 1
      %p82 = por %p80, %p81
      %p83 = scmp.ne.s32.totalorder %s74, %s75
      %p84 = scmp.eq.s32.totalorder %s22, 0
      %p85 = por %p83, %p84
      %p86 = scmp.ne.s32.totalorder %s74, %s75
      %p87 = scmp.eq.s32.totalorder %s23, 1
      %p88 = por %p86, %p87
      %p90 = scmp.ne.s32.totalorder %s75, %s89
      %p91 = scmp.eq.s32.totalorder %s23, 0
      %p92 = por %p90, %p91
      %s94 = sadd.s32 %s93, 1
      %p97 = scmp.eq.s32.totalorder %s17, 1
      %p98 = scmp.ne.s32.totalorder %s93, %s95
      %p99 = scmp.eq.s32.totalorder %s17, 0
      %p100 = por %p98, %p99
      %p101 = scmp.ne.s32.totalorder %s93, %s95
      %p102 = scmp.eq.s32.totalorder %s22, 1
      %p103 = por %p101, %p102
      %p104 = scmp.ne.s32.totalorder %s95, %s96
      %p105 = scmp.eq.s32.totalorder %s22, 0
      %p106 = por %p104, %p105
      %p107 = scmp.ne.s32.totalorder %s95, %s96
      %p108 = scmp.eq.s32.totalorder %s23, 1
      %p109 = por %p107, %p108
      %p111 = scmp.ne.s32.totalorder %s96, %s110
      %p112 = scmp.eq.s32.totalorder %s23, 0
      %p113 = por %p111, %p112
      %s115 = sadd.s32 %s114, 1
      %p118 = scmp.eq.s32.totalorder %s17, 1
      %p119 = scmp.ne.s32.totalorder %s114, %s116
      %p120 = scmp.eq.s32.totalorder %s17, 0
      %p121 = por %p119, %p120
      %p122 = scmp.ne.s32.totalorder %s114, %s116
      %p123 = scmp.eq.s32.totalorder %s22, 1
      %p124 = por %p122, %p123
      %p125 = scmp.ne.s32.totalorder %s116, %s117
      %p126 = scmp.eq.s32.totalorder %s22, 0
      %p127 = por %p125, %p126
      %p128 = scmp.ne.s32.totalorder %s116, %s117
      %p129 = scmp.eq.s32.totalorder %s23, 1
      %p130 = por %p128, %p129
      %p132 = scmp.ne.s32.totalorder %s117, %s131
      %p133 = scmp.eq.s32.totalorder %s23, 0
      %p134 = por %p132, %p133
      %s136 = sadd.s32 %s135, 1
      %p139 = scmp.eq.s32.totalorder %s17, 1
      %p140 = scmp.ne.s32.totalorder %s135, %s137
      %p141 = scmp.eq.s32.totalorder %s17, 0
      %p142 = por %p140, %p141
      %p143 = scmp.ne.s32.totalorder %s135, %s137
      %p144 = scmp.eq.s32.totalorder %s22, 1
      %p145 = por %p143, %p144
      %p146 = scmp.ne.s32.totalorder %s137, %s138
      %p147 = scmp.eq.s32.totalorder %s22, 0
      %p148 = por %p146, %p147
      %p149 = scmp.ne.s32.totalorder %s137, %s138
      %p150 = scmp.eq.s32.totalorder %s23, 1
      %p151 = por %p149, %p150
      %p153 = scmp.ne.s32.totalorder %s138, %s152
      %p154 = scmp.eq.s32.totalorder %s23, 0
      %p155 = por %p153, %p154
      %s157 = sadd.s32 %s156, 1
      %p160 = scmp.eq.s32.totalorder %s17, 1
      %p161 = scmp.ne.s32.totalorder %s156, %s158
      %p162 = scmp.eq.s32.totalorder %s17, 0
      %p163 = por %p161, %p162
      %p164 = scmp.ne.s32.totalorder %s156, %s158
      %p165 = scmp.eq.s32.totalorder %s22, 1
      %p166 = por %p164, %p165
      %p167 = scmp.ne.s32.totalorder %s158, %s159
      %p168 = scmp.eq.s32.totalorder %s22, 0
      %p169 = por %p167, %p168
      %p170 = scmp.ne.s32.totalorder %s158, %s159
      %p171 = scmp.eq.s32.totalorder %s23, 1
      %p172 = por %p170, %p171
      %p174 = scmp.ne.s32.totalorder %s159, %s173
      %p175 = scmp.eq.s32.totalorder %s23, 0
      %p176 = por %p174, %p175
      %s178 = sadd.s32 %s177, 1
      %p181 = scmp.eq.s32.totalorder %s17, 1
      %p182 = scmp.ne.s32.totalorder %s177, %s179
      %p183 = scmp.eq.s32.totalorder %s17, 0
      %p184 = por %p182, %p183
      %p185 = scmp.ne.s32.totalorder %s177, %s179
      %p186 = scmp.eq.s32.totalorder %s22, 1
      %p187 = por %p185, %p186
      %p188 = scmp.ne.s32.totalorder %s179, %s180
      %p189 = scmp.eq.s32.totalorder %s22, 0
      %p190 = por %p188, %p189
      %p191 = scmp.ne.s32.totalorder %s179, %s180
      %p192 = scmp.eq.s32.totalorder %s23, 1
      %p193 = por %p191, %p192
      %p195 = scmp.ne.s32.totalorder %s180, %s194
      %p196 = scmp.eq.s32.totalorder %s23, 0
      %p197 = por %p195, %p196
      %s198 = ssub.s32 %s17, %s24
      %p199 = scmp.eq.s32.totalorder %s198, 0
      %s201 = sadd.s32 %s200, 1
      %s202 = scalar_select %p199, %s200, %s201
      %p205 = pneg %p199
      %p206 = scmp.eq.s32.totalorder %s17, 1
      %p207 = por %p205, %p206
      %p208 = scmp.ne.s32.totalorder %s200, %s203
      %p209 = scmp.eq.s32.totalorder %s17, 0
      %p210 = por %p208, %p209
      %p211 = scmp.ne.s32.totalorder %s200, %s203
      %p212 = scmp.eq.s32.totalorder %s22, 1
      %p213 = por %p211, %p212
      %p214 = scmp.ne.s32.totalorder %s203, %s204
      %p215 = scmp.eq.s32.totalorder %s22, 0
      %p216 = por %p214, %p215
      %p217 = scmp.ne.s32.totalorder %s203, %s204
      %p218 = scmp.eq.s32.totalorder %s23, 1
      %p219 = por %p217, %p218
      %p221 = scmp.ne.s32.totalorder %s204, %s220
      %p222 = scmp.eq.s32.totalorder %s23, 0
      %p223 = por %p221, %p222
      %p224 = scmp.le.s32.totalorder 1, %s17
      %p225 = scmp.lt.s32.totalorder %s17, 3
      %p226 = pnand %p224, %p225
      %p227 = pneg %p226
      // Predicated region
      $region9: #{tpu_custom_call.1} parent=5 // pred_check
        _
      $region10: #{tpu_custom_call.1} parent=5 // pred_check_branch
        %229 = sbr.rel (%p226) target = $region12
      $region11: #{tpu_custom_call.1} parent=5 // pred_region
        %s230 = ssub.s32 %s17, 1
        // Predicated region
        $region13: #{tpu_custom_call.1} parent=11 // pred_check
          %p231 = pneg %p64
        $region14: #{tpu_custom_call.1} parent=11 // pred_check_branch
          %233 = sbr.rel (%p231) target = $region16
        $region15: #{tpu_custom_call.1} parent=11 // pred_region
          _
        $region16: #{tpu_custom_call.1} parent=11 // pred_fallthru
          _
        // Predicated region
        $region17: #{tpu_custom_call.1} parent=11 // pred_check
          %p234 = pneg %p85
        $region18: #{tpu_custom_call.1} parent=11 // pred_check_branch
          %236 = sbr.rel (%p234) target = $region20
        $region19: #{tpu_custom_call.1} parent=11 // pred_region
          _
        $region20: #{tpu_custom_call.1} parent=11 // pred_fallthru
          _
        // Predicated region
        $region21: #{tpu_custom_call.1} parent=11 // pred_check
          %p237 = pneg %p106
        $region22: #{tpu_custom_call.1} parent=11 // pred_check_branch
          %239 = sbr.rel (%p237) target = $region24
        $region23: #{tpu_custom_call.1} parent=11 // pred_region
          _
        $region24: #{tpu_custom_call.1} parent=11 // pred_fallthru
          _
        // Predicated region
        $region25: #{tpu_custom_call.1} parent=11 // pred_check
          %p240 = pneg %p127
        $region26: #{tpu_custom_call.1} parent=11 // pred_check_branch
          %242 = sbr.rel (%p240) target = $region28
        $region27: #{tpu_custom_call.1} parent=11 // pred_region
          _
        $region28: #{tpu_custom_call.1} parent=11 // pred_fallthru
          _
        // Predicated region
        $region29: #{tpu_custom_call.1} parent=11 // pred_check
          %p243 = pneg %p148
        $region30: #{tpu_custom_call.1} parent=11 // pred_check_branch
          %245 = sbr.rel (%p243) target = $region32
        $region31: #{tpu_custom_call.1} parent=11 // pred_region
          _
        $region32: #{tpu_custom_call.1} parent=11 // pred_fallthru
          _
        // Predicated region
        $region33: #{tpu_custom_call.1} parent=11 // pred_check
          %p246 = pneg %p169
        $region34: #{tpu_custom_call.1} parent=11 // pred_check_branch
          %248 = sbr.rel (%p246) target = $region36
        $region35: #{tpu_custom_call.1} parent=11 // pred_region
          _
        $region36: #{tpu_custom_call.1} parent=11 // pred_fallthru
          _
        // Predicated region
        $region37: #{tpu_custom_call.1} parent=11 // pred_check
          %p249 = pneg %p190
        $region38: #{tpu_custom_call.1} parent=11 // pred_check_branch
          %251 = sbr.rel (%p249) target = $region40
        $region39: #{tpu_custom_call.1} parent=11 // pred_region
          _
        $region40: #{tpu_custom_call.1} parent=11 // pred_fallthru
          _
      $region12: #{tpu_custom_call.1} parent=5 // pred_fallthru
        _
      %p252 = scmp.lt.s32.totalorder %s17, 2
      // Predicated region
      $region41: #{tpu_custom_call.1} parent=5 // pred_check
        %p253 = pneg %p252
      $region42: #{tpu_custom_call.1} parent=5 // pred_check_branch
        %255 = sbr.rel (%p253) target = $region44
      $region43: #{tpu_custom_call.1} parent=5 // pred_region
        // Predicated region
        $region45: #{tpu_custom_call.1} parent=43 // pred_check
          %p256 = pneg %p37
        $region46: #{tpu_custom_call.1} parent=43 // pred_check_branch
          %258 = sbr.rel (%p256) target = $region48
        $region47: #{tpu_custom_call.1} parent=43 // pred_region
          %s259 = smul.u32 8, %s17
          %p260 = scmp.lt.s32.totalorder %s259, 15
          %s261 = scalar_select %p260, %s259, 15
          %s262 = smul.addr %s261, 2
          %s263 = smul.addr %s262, 8
          %s264 = scalar_lea.vmem %s0, %s263
          %s265 = smul.u32 8, %s17
        $region48: #{tpu_custom_call.1} parent=43 // pred_fallthru
          _
      $region44: #{tpu_custom_call.1} parent=5 // pred_fallthru
        _
      %p266 = scmp.le.s32.totalorder 1, %s17
      %p267 = scmp.lt.s32.totalorder %s17, 3
      %p268 = pnand %p266, %p267
      %p269 = pneg %p268
      // Predicated region
      $region49: #{tpu_custom_call.1} parent=5 // pred_check
        _
      $region50: #{tpu_custom_call.1} parent=5 // pred_check_branch
        %271 = sbr.rel (%p268) target = $region52
      $region51: #{tpu_custom_call.1} parent=5 // pred_region
        %s272 = ssub.s32 %s17, 1
        %s273 = smul.u32 8, %s22
        %p274 = scmp.lt.s32.totalorder %s273, 15
        %s275 = scalar_select %p274, %s273, 15
        %s276 = smul.addr %s275, 2
        %s277 = smul.addr %s276, 8
        %s278 = scalar_lea.vmem %s0, %s277
        %p279 = pneg %p43
        %p280 = pneg %p40
        %p281 = pneg %p64
        %p282 = pneg %p61
        %p283 = pneg %p85
        %p284 = pneg %p82
        %p285 = pneg %p106
        %p286 = pneg %p103
        %p287 = pneg %p127
        %p288 = pneg %p124
        %p289 = pneg %p148
        %p290 = pneg %p145
        %p291 = pneg %p169
        %p292 = pneg %p166
        %p293 = pneg %p190
        %p294 = pneg %p187
        %p295 = pneg %p216
        %p296 = pneg %p213
        %s297 = sand.u32 %s203, 1
        %s298 = scalar_lea.sflag [#allocation3], %s297
        %s299 = sand.u32 %s203, 1
        %s300 = smul.addr %s299, 128
        %s301 = scalar_lea.vmem [#allocation2], %s300
        %s302 = smul.u32 8, %s22
        %p303 = scmp.lt.s32.totalorder %s302, 15
        %s304 = scalar_select %p303, %s302, 15
        %s305 = smul.addr %s304, 2
        %s306 = smul.addr %s305, 8
        %s307 = scalar_lea.vmem %s0, %s306
        %s308 = smul.u32 8, %s22
        %s309 = smul.u32 8, %s22
        %v310 = vld [vmem:[%s307] sm:$0xff]
        %v311 = vld [vmem:[%s307 + $0x8] sm:$0xff]
        %v312 = vld [vmem:[%s307 + $0x10] sm:$0xff]
        %v313 = vld [vmem:[%s307 + $0x18] sm:$0xff]
        %v314 = vld [vmem:[%s307 + $0x20] sm:$0xff]
        %v315 = vld [vmem:[%s307 + $0x28] sm:$0xff]
        %v316 = vld [vmem:[%s307 + $0x30] sm:$0xff]
        %v317 = vld [vmem:[%s307 + $0x38] sm:$0xff]
        %v318 = vld [vmem:[%s307 + $0x40] sm:$0xff]
        %v319 = vld [vmem:[%s307 + $0x48] sm:$0xff]
        %v320 = vld [vmem:[%s307 + $0x50] sm:$0xff]
        %v321 = vld [vmem:[%s307 + $0x58] sm:$0xff]
        %v322 = vld [vmem:[%s307 + $0x60] sm:$0xff]
        %v323 = vld [vmem:[%s307 + $0x68] sm:$0xff]
        %v324 = vld [vmem:[%s307 + $0x70] sm:$0xff]
        %v325 = vld [vmem:[%s307 + $0x78] sm:$0xff]
        %v326 = vld [vmem:[%s5] sm:$0xff]
        %v327 = vld [vmem:[%s5 + $0x8] sm:$0xff]
        %v328 = vld [vmem:[%s5 + $0x10] sm:$0xff]
        %v329 = vld [vmem:[%s5 + $0x18] sm:$0xff]
        %v330 = vld [vmem:[%s5 + $0x20] sm:$0xff]
        %v331 = vld [vmem:[%s5 + $0x28] sm:$0xff]
        %v332 = vld [vmem:[%s5 + $0x30] sm:$0xff]
        %v333 = vld [vmem:[%s5 + $0x38] sm:$0xff]
        %v334 = vld [vmem:[%s5 + $0x40] sm:$0xff]
        %v335 = vld [vmem:[%s5 + $0x48] sm:$0xff]
        %v336 = vld [vmem:[%s5 + $0x50] sm:$0xff]
        %v337 = vld [vmem:[%s5 + $0x58] sm:$0xff]
        %v338 = vld [vmem:[%s5 + $0x60] sm:$0xff]
        %v339 = vld [vmem:[%s5 + $0x68] sm:$0xff]
        %v340 = vld [vmem:[%s5 + $0x70] sm:$0xff]
        %v341 = vld [vmem:[%s5 + $0x78] sm:$0xff]
        %v342 = vld [vmem:[%s5 + $0x80] sm:$0xff]
        %v343 = vld [vmem:[%s5 + $0x88] sm:$0xff]
        %v344 = vld [vmem:[%s5 + $0x90] sm:$0xff]
        %v345 = vld [vmem:[%s5 + $0x98] sm:$0xff]
        %v346 = vld [vmem:[%s5 + $0xa0] sm:$0xff]
        %v347 = vld [vmem:[%s5 + $0xa8] sm:$0xff]
        %v348 = vld [vmem:[%s5 + $0xb0] sm:$0xff]
        %v349 = vld [vmem:[%s5 + $0xb8] sm:$0xff]
        %v350 = vld [vmem:[%s5 + $0xc0] sm:$0xff]
        %v351 = vld [vmem:[%s5 + $0xc8] sm:$0xff]
        %v352 = vld [vmem:[%s5 + $0xd0] sm:$0xff]
        %v353 = vld [vmem:[%s5 + $0xd8] sm:$0xff]
        %v354 = vld [vmem:[%s5 + $0xe0] sm:$0xff]
        %v355 = vld [vmem:[%s5 + $0xe8] sm:$0xff]
        %v356 = vld [vmem:[%s5 + $0xf0] sm:$0xff]
        %v357 = vld [vmem:[%s5 + $0xf8] sm:$0xff]
        %358 = vmatprep.subr.mxu0 0.0
        %359 = vmatpush1.msra.mxu0 %v326
        %360 = vmatprep.subr.mxu0 0.0
        %361 = vmatpush1.msra.mxu0 %v327
        %362 = vmatprep.subr.mxu0 0.0
        %363 = vmatpush1.msra.mxu0 %v328
        %364 = vmatprep.subr.mxu0 0.0
        %365 = vmatpush1.msra.mxu0 %v329
        %366 = vmatprep.subr.mxu0 0.0
        %367 = vmatpush1.msra.mxu0 %v330
        %368 = vmatprep.subr.mxu0 0.0
        %369 = vmatpush1.msra.mxu0 %v331
        %370 = vmatprep.subr.mxu0 0.0
        %371 = vmatpush1.msra.mxu0 %v332
        %372 = vmatprep.subr.mxu0 0.0
        %373 = vmatpush1.msra.mxu0 %v333
        %374 = vmatprep.subr.mxu0 0.0
        %375 = vmatpush1.msra.mxu0 %v334
        %376 = vmatprep.subr.mxu0 0.0
        %377 = vmatpush1.msra.mxu0 %v335
        %378 = vmatprep.subr.mxu0 0.0
        %379 = vmatpush1.msra.mxu0 %v336
        %380 = vmatprep.subr.mxu0 0.0
        %381 = vmatpush1.msra.mxu0 %v337
        %382 = vmatprep.subr.mxu0 0.0
        %383 = vmatpush1.msra.mxu0 %v338
        %384 = vmatprep.subr.mxu0 0.0
        %385 = vmatpush1.msra.mxu0 %v339
        %386 = vmatprep.subr.mxu0 0.0
        %387 = vmatpush1.msra.mxu0 %v340
        %388 = vmatprep.subr.mxu0 0.0
        %389 = vmatpush1.msra.mxu0 %v341
        %390 = vmatprep.subr.mxu0 0.0
        %391 = vmatpush1.msra.mxu0 %v342
        %392 = vmatprep.subr.mxu0 0.0
        %393 = vmatpush1.msra.mxu0 %v343
        %394 = vmatprep.subr.mxu0 0.0
        %395 = vmatpush1.msra.mxu0 %v344
        %396 = vmatprep.subr.mxu0 0.0
        %397 = vmatpush1.msra.mxu0 %v345
        %398 = vmatprep.subr.mxu0 0.0
        %399 = vmatpush1.msra.mxu0 %v346
        %400 = vmatprep.subr.mxu0 0.0
        %401 = vmatpush1.msra.mxu0 %v347
        %402 = vmatprep.subr.mxu0 0.0
        %403 = vmatpush1.msra.mxu0 %v348
        %404 = vmatprep.subr.mxu0 0.0
        %405 = vmatpush1.msra.mxu0 %v349
        %406 = vmatprep.subr.mxu0 0.0
        %407 = vmatpush1.msra.mxu0 %v350
        %408 = vmatprep.subr.mxu0 0.0
        %409 = vmatpush1.msra.mxu0 %v351
        %410 = vmatprep.subr.mxu0 0.0
        %411 = vmatpush1.msra.mxu0 %v352
        %412 = vmatprep.subr.mxu0 0.0
        %413 = vmatpush1.msra.mxu0 %v353
        %414 = vmatprep.subr.mxu0 0.0
        %415 = vmatpush1.msra.mxu0 %v354
        %416 = vmatprep.subr.mxu0 0.0
        %417 = vmatpush1.msra.mxu0 %v355
        %418 = vmatprep.subr.mxu0 0.0
        %419 = vmatpush1.msra.mxu0 %v356
        %420 = vmatprep.subr.mxu0 0.0
        %421 = vmatpush1.msra.mxu0 %v357
        %422 = vmatprep.mubr.f32.mxu0 %v311
        %423 = vmatmul.mubr.f32.gmra.mrb[0].mxu0 %v310
        %v424 = vpop.f32.mrb[0].mxu0
        %v425 = vadd.f32 0.0, %v424
        %v426 = vpop.f32.mrb[0].mxu0
        %427 = vmatprep.mubr.f32.mxu0 %v313
        %428 = vmatmul.mubr.f32.gmra.mrb[0].mxu0 %v312
        %v429 = vpop.f32.mrb[0].mxu0
        %v430 = vadd.f32 0.0, %v429
        %v431 = vpop.f32.mrb[0].mxu0
        %432 = vmatprep.mubr.f32.mxu0 %v315
        %433 = vmatmul.mubr.f32.gmra.mrb[0].mxu0 %v314
        %v434 = vpop.f32.mrb[0].mxu0
        %v435 = vadd.f32 0.0, %v434
        %v436 = vpop.f32.mrb[0].mxu0
        %437 = vmatprep.mubr.f32.mxu0 %v317
        %438 = vmatmul.mubr.f32.gmra.mrb[0].mxu0 %v316
        %v439 = vpop.f32.mrb[0].mxu0
        %v440 = vadd.f32 0.0, %v439
        %v441 = vpop.f32.mrb[0].mxu0
        %442 = vmatprep.mubr.f32.mxu0 %v319
        %443 = vmatmul.mubr.f32.gmra.mrb[0].mxu0 %v318
        %v444 = vpop.f32.mrb[0].mxu0
        %v445 = vadd.f32 0.0, %v444
        %v446 = vpop.f32.mrb[0].mxu0
        %447 = vmatprep.mubr.f32.mxu0 %v321
        %448 = vmatmul.mubr.f32.gmra.mrb[0].mxu0 %v320
        %v449 = vpop.f32.mrb[0].mxu0
        %v450 = vadd.f32 0.0, %v449
        %v451 = vpop.f32.mrb[0].mxu0
        %452 = vmatprep.mubr.f32.mxu0 %v323
        %453 = vmatmul.mubr.f32.gmra.mrb[0].mxu0 %v322
        %v454 = vpop.f32.mrb[0].mxu0
        %v455 = vadd.f32 0.0, %v454
        %v456 = vpop.f32.mrb[0].mxu0
        %457 = vmatprep.mubr.f32.mxu0 %v325
        %458 = vmatmul.mubr.f32.gmra.mrb[0].mxu0 %v324
        %v459 = vpop.f32.mrb[0].mxu0
        %v460 = vadd.f32 0.0, %v459
        %v461 = vpop.f32.mrb[0].mxu0
        %462 = vdwg.mxu0
        %v463 = vld [vmem:[%s1] sm:$0xf]
        %v464 = vld [vmem:[%s2] sm:$0xf]
        %466 = vset.pattern.permute.xlu0 0
        %467 = vperm.xlu0 %466, %v464
        %v468 = vpop.permute.xlu0 %467
        %vm470 = vcmask 523264
        %v472 = vsel %vm470, %v463, 0
        %474 = vmatprep.subr.mxu0 0.0
        %475 = vmatpush1.msra.mxu0 %v425
        %476 = vmatprep.subr.mxu0 0.0
        %477 = vmatpush1.msra.mxu0 %v430
        %478 = vmatprep.subr.mxu0 0.0
        %479 = vmatpush1.msra.mxu0 %v435
        %480 = vmatprep.subr.mxu0 0.0
        %481 = vmatpush1.msra.mxu0 %v440
        %482 = vmatprep.subr.mxu0 0.0
        %483 = vmatpush1.msra.mxu0 %v445
        %484 = vmatprep.subr.mxu0 0.0
        %485 = vmatpush1.msra.mxu0 %v450
        %486 = vmatprep.subr.mxu0 0.0
        %487 = vmatpush1.msra.mxu0 %v455
        %488 = vmatprep.subr.mxu0 0.0
        %489 = vmatpush1.msra.mxu0 %v460
        %490 = vmatprep.subr.mxu0 0.0
        %491 = vmatpush1.msra.mxu0 0.0
        %492 = vmatprep.subr.mxu0 0.0
        %493 = vmatpush1.msra.mxu0 0.0
        %494 = vmatprep.subr.mxu0 0.0
        %495 = vmatpush1.msra.mxu0 0.0
        %496 = vmatprep.subr.mxu0 0.0
        %497 = vmatpush1.msra.mxu0 0.0
        %498 = vmatprep.subr.mxu0 0.0
        %499 = vmatpush1.msra.mxu0 0.0
        %500 = vmatprep.subr.mxu0 0.0
        %501 = vmatpush1.msra.mxu0 0.0
        %502 = vmatprep.subr.mxu0 0.0
        %503 = vmatpush1.msra.mxu0 0.0
        %504 = vmatprep.subr.mxu0 0.0
        %505 = vmatpush1.msra.mxu0 0.0
        %506 = vmatprep.subr.mxu0 0.0
        %507 = vmatpush1.msra.mxu0 0.0
        %508 = vmatprep.subr.mxu0 0.0
        %509 = vmatpush1.msra.mxu0 0.0
        %510 = vmatprep.subr.mxu0 0.0
        %511 = vmatpush1.msra.mxu0 0.0
        %512 = vmatprep.subr.mxu0 0.0
        %513 = vmatpush1.msra.mxu0 0.0
        %514 = vmatprep.subr.mxu0 0.0
        %515 = vmatpush1.msra.mxu0 0.0
        %516 = vmatprep.subr.mxu0 0.0
        %517 = vmatpush1.msra.mxu0 0.0
        %518 = vmatprep.subr.mxu0 0.0
        %519 = vmatpush1.msra.mxu0 0.0
        %520 = vmatprep.subr.mxu0 0.0
        %521 = vmatpush1.msra.mxu0 0.0
        %522 = vmatprep.subr.mxu0 0.0
        %523 = vmatpush1.msra.mxu0 0.0
        %524 = vmatprep.subr.mxu0 0.0
        %525 = vmatpush1.msra.mxu0 0.0
        %526 = vmatprep.subr.mxu0 0.0
        %527 = vmatpush1.msra.mxu0 0.0
        %528 = vmatprep.subr.mxu0 0.0
        %529 = vmatpush1.msra.mxu0 0.0
        %530 = vmatprep.subr.mxu0 0.0
        %531 = vmatpush1.msra.mxu0 0.0
        %532 = vmatprep.subr.mxu0 0.0
        %533 = vmatpush1.msra.mxu0 0.0
        %534 = vmatprep.subr.mxu0 0.0
        %535 = vmatpush1.msra.mxu0 0.0
        %536 = vmatprep.subr.mxu0 0.0
        %537 = vmatpush1.msra.mxu0 0.0
        %538 = vmatprep.mubr.f32.mxu0 0.0
        %539 = vmatmul.mubr.f32.gmra.mrb[0].mxu0 %v472
        %v540 = vpop.f32.mrb[0].mxu0
        %v541 = vadd.f32 %v468, %v540
        %v542 = vpop.f32.mrb[0].mxu0
        %543 = vdwg.mxu0
        %v544 = vadd.f32 %v541, 3.0
        %v545 = vmax.f32 %v544, 0.0
        %v546 = vmin.f32 %v545, 6.0
        %v547 = vmul.f32 %v541, %v546
        %v548 = vmul.f32 %v547, 0.16666667
        %v549 = vld [vmem:[%s3] sm:$0xff]
        %v550 = vld [vmem:[%s3 + $0x8] sm:$0xff]
        %v551 = vld [vmem:[%s3 + $0x10] sm:$0xff]
        %v552 = vld [vmem:[%s3 + $0x18] sm:$0xff]
        %v553 = vld [vmem:[%s3 + $0x20] sm:$0xff]
        %v554 = vld [vmem:[%s3 + $0x28] sm:$0xff]
        %v555 = vld [vmem:[%s3 + $0x30] sm:$0xff]
        %v556 = vld [vmem:[%s3 + $0x38] sm:$0xff]
        %vm557 = vcmask 31744
        %v559 = vsel %vm557, %v549, 0
        %v562 = vsel %vm557, %v550, 0
        %v565 = vsel %vm557, %v551, 0
        %v568 = vsel %vm557, %v552, 0
        %v571 = vsel %vm557, %v553, 0
        %v574 = vsel %vm557, %v554, 0
        %v577 = vsel %vm557, %v555, 0
        %v580 = vsel %vm557, %v556, 0
        %vm582 = vcmask 1043456
        %v584 = vsel %vm582, %v548, 0
        %586 = vmatprep.subr.mxu0 0.0
        %587 = vmatpush1.msra.mxu0 %v584
        %588 = vmatprep.subr.mxu0 0.0
        %589 = vmatpush1.msra.mxu0 0.0
        %590 = vmatprep.subr.mxu0 0.0
        %591 = vmatpush1.msra.mxu0 0.0
        %592 = vmatprep.subr.mxu0 0.0
        %593 = vmatpush1.msra.mxu0 0.0
        %594 = vmatprep.subr.mxu0 0.0
        %595 = vmatpush1.msra.mxu0 0.0
        %596 = vmatprep.subr.mxu0 0.0
        %597 = vmatpush1.msra.mxu0 0.0
        %598 = vmatprep.subr.mxu0 0.0
        %599 = vmatpush1.msra.mxu0 0.0
        %600 = vmatprep.subr.mxu0 0.0
        %601 = vmatpush1.msra.mxu0 0.0
        %602 = vmatprep.subr.mxu0 0.0
        %603 = vmatpush1.msra.mxu0 0.0
        %604 = vmatprep.subr.mxu0 0.0
        %605 = vmatpush1.msra.mxu0 0.0
        %606 = vmatprep.subr.mxu0 0.0
        %607 = vmatpush1.msra.mxu0 0.0
        %608 = vmatprep.subr.mxu0 0.0
        %609 = vmatpush1.msra.mxu0 0.0
        %610 = vmatprep.subr.mxu0 0.0
        %611 = vmatpush1.msra.mxu0 0.0
        %612 = vmatprep.subr.mxu0 0.0
        %613 = vmatpush1.msra.mxu0 0.0
        %614 = vmatprep.subr.mxu0 0.0
        %615 = vmatpush1.msra.mxu0 0.0
        %616 = vmatprep.subr.mxu0 0.0
        %617 = vmatpush1.msra.mxu0 0.0
        %618 = vmatprep.subr.mxu0 0.0
        %619 = vmatpush1.msra.mxu0 0.0
        %620 = vmatprep.subr.mxu0 0.0
        %621 = vmatpush1.msra.mxu0 0.0
        %622 = vmatprep.subr.mxu0 0.0
        %623 = vmatpush1.msra.mxu0 0.0
        %624 = vmatprep.subr.mxu0 0.0
        %625 = vmatpush1.msra.mxu0 0.0
        %626 = vmatprep.subr.mxu0 0.0
        %627 = vmatpush1.msra.mxu0 0.0
        %628 = vmatprep.subr.mxu0 0.0
        %629 = vmatpush1.msra.mxu0 0.0
        %630 = vmatprep.subr.mxu0 0.0
        %631 = vmatpush1.msra.mxu0 0.0
        %632 = vmatprep.subr.mxu0 0.0
        %633 = vmatpush1.msra.mxu0 0.0
        %634 = vmatprep.subr.mxu0 0.0
        %635 = vmatpush1.msra.mxu0 0.0
        %636 = vmatprep.subr.mxu0 0.0
        %637 = vmatpush1.msra.mxu0 0.0
        %638 = vmatprep.subr.mxu0 0.0
        %639 = vmatpush1.msra.mxu0 0.0
        %640 = vmatprep.subr.mxu0 0.0
        %641 = vmatpush1.msra.mxu0 0.0
        %642 = vmatprep.subr.mxu0 0.0
        %643 = vmatpush1.msra.mxu0 0.0
        %644 = vmatprep.subr.mxu0 0.0
        %645 = vmatpush1.msra.mxu0 0.0
        %646 = vmatprep.subr.mxu0 0.0
        %647 = vmatpush1.msra.mxu0 0.0
        %648 = vmatprep.subr.mxu0 0.0
        %649 = vmatpush1.msra.mxu0 0.0
        %650 = vmatprep.mubr.f32.mxu0 0.0
        %651 = vmatmul.mubr.f32.gmra.mrb[0].mxu0 %v559
        %v652 = vpop.f32.mrb[0].mxu0
        %v653 = vadd.f32 0.0, %v652
        %v654 = vpop.f32.mrb[0].mxu0
        %655 = vmatprep.mubr.f32.mxu0 0.0
        %656 = vmatmul.mubr.f32.gmra.mrb[0].mxu0 %v562
        %v657 = vpop.f32.mrb[0].mxu0
        %v658 = vadd.f32 0.0, %v657
        %v659 = vpop.f32.mrb[0].mxu0
        %660 = vmatprep.mubr.f32.mxu0 0.0
        %661 = vmatmul.mubr.f32.gmra.mrb[0].mxu0 %v565
        %v662 = vpop.f32.mrb[0].mxu0
        %v663 = vadd.f32 0.0, %v662
        %v664 = vpop.f32.mrb[0].mxu0
        %665 = vmatprep.mubr.f32.mxu0 0.0
        %666 = vmatmul.mubr.f32.gmra.mrb[0].mxu0 %v568
        %v667 = vpop.f32.mrb[0].mxu0
        %v668 = vadd.f32 0.0, %v667
        %v669 = vpop.f32.mrb[0].mxu0
        %670 = vmatprep.mubr.f32.mxu0 0.0
        %671 = vmatmul.mubr.f32.gmra.mrb[0].mxu0 %v571
        %v672 = vpop.f32.mrb[0].mxu0
        %v673 = vadd.f32 0.0, %v672
        %v674 = vpop.f32.mrb[0].mxu0
        %675 = vmatprep.mubr.f32.mxu0 0.0
        %676 = vmatmul.mubr.f32.gmra.mrb[0].mxu0 %v574
        %v677 = vpop.f32.mrb[0].mxu0
        %v678 = vadd.f32 0.0, %v677
        %v679 = vpop.f32.mrb[0].mxu0
        %680 = vmatprep.mubr.f32.mxu0 0.0
        %681 = vmatmul.mubr.f32.gmra.mrb[0].mxu0 %v577
        %v682 = vpop.f32.mrb[0].mxu0
        %v683 = vadd.f32 0.0, %v682
        %v684 = vpop.f32.mrb[0].mxu0
        %685 = vmatprep.mubr.f32.mxu0 0.0
        %686 = vmatmul.mubr.f32.gmra.mrb[0].mxu0 %v580
        %v687 = vpop.f32.mrb[0].mxu0
        %v688 = vadd.f32 0.0, %v687
        %v689 = vpop.f32.mrb[0].mxu0
        %690 = vdwg.mxu0
        %v691 = vxor.u32 %v653, 2147483648
        %v692 = vxor.u32 %v658, 2147483648
        %v693 = vxor.u32 %v663, 2147483648
        %v694 = vxor.u32 %v668, 2147483648
        %v695 = vxor.u32 %v673, 2147483648
        %v696 = vxor.u32 %v678, 2147483648
        %v697 = vxor.u32 %v683, 2147483648
        %v698 = vxor.u32 %v688, 2147483648
        %v699 = vmul.f32 %v691, 1.442695
        %v700 = vpow.pop %v699
        %v701 = vmul.f32 %v692, 1.442695
        %v702 = vpow.pop %v701
        %v703 = vmul.f32 %v693, 1.442695
        %v704 = vpow.pop %v703
        %v705 = vmul.f32 %v694, 1.442695
        %v706 = vpow.pop %v705
        %v707 = vmul.f32 %v695, 1.442695
        %v708 = vpow.pop %v707
        %v709 = vmul.f32 %v696, 1.442695
        %v710 = vpow.pop %v709
        %v711 = vmul.f32 %v697, 1.442695
        %v712 = vpow.pop %v711
        %v713 = vmul.f32 %v698, 1.442695
        %v714 = vpow.pop %v713
        %v715 = vadd.f32 %v700, 1.0
        %v716 = vadd.f32 %v702, 1.0
        %v717 = vadd.f32 %v704, 1.0
        %v718 = vadd.f32 %v706, 1.0
        %v719 = vadd.f32 %v708, 1.0
        %v720 = vadd.f32 %v710, 1.0
        %v721 = vadd.f32 %v712, 1.0
        %v722 = vadd.f32 %v714, 1.0
        %v723 = vrcp.pop %v715
        %v724 = vmul.f32 1.0, %v723
        %v725 = vrcp.pop %v716
        %v726 = vmul.f32 1.0, %v725
        %v727 = vrcp.pop %v717
        %v728 = vmul.f32 1.0, %v727
        %v729 = vrcp.pop %v718
        %v730 = vmul.f32 1.0, %v729
        %v731 = vrcp.pop %v719
        %v732 = vmul.f32 1.0, %v731
        %v733 = vrcp.pop %v720
        %v734 = vmul.f32 1.0, %v733
        %v735 = vrcp.pop %v721
        %v736 = vmul.f32 1.0, %v735
        %v737 = vrcp.pop %v722
        %v738 = vmul.f32 1.0, %v737
        %v739 = vld [vmem:[%s4] sm:$0xff]
        %v740 = vld [vmem:[%s4 + $0x8] sm:$0xff]
        %v741 = vld [vmem:[%s4 + $0x10] sm:$0xff]
        %v742 = vld [vmem:[%s4 + $0x18] sm:$0xff]
        %v743 = vld [vmem:[%s4 + $0x20] sm:$0xff]
        %v744 = vld [vmem:[%s4 + $0x28] sm:$0xff]
        %v745 = vld [vmem:[%s4 + $0x30] sm:$0xff]
        %v746 = vld [vmem:[%s4 + $0x38] sm:$0xff]
        %v748 = vsel %vm557, %v739, 0
        %v751 = vsel %vm557, %v740, 0
        %v754 = vsel %vm557, %v741, 0
        %v757 = vsel %vm557, %v742, 0
        %v760 = vsel %vm557, %v743, 0
        %v763 = vsel %vm557, %v744, 0
        %v766 = vsel %vm557, %v745, 0
        %v769 = vsel %vm557, %v746, 0
        %771 = vmatprep.subr.mxu0 0.0
        %772 = vmatpush1.msra.mxu0 %v584
        %773 = vmatprep.subr.mxu0 0.0
        %774 = vmatpush1.msra.mxu0 0.0
        %775 = vmatprep.subr.mxu0 0.0
        %776 = vmatpush1.msra.mxu0 0.0
        %777 = vmatprep.subr.mxu0 0.0
        %778 = vmatpush1.msra.mxu0 0.0
        %779 = vmatprep.subr.mxu0 0.0
        %780 = vmatpush1.msra.mxu0 0.0
        %781 = vmatprep.subr.mxu0 0.0
        %782 = vmatpush1.msra.mxu0 0.0
        %783 = vmatprep.subr.mxu0 0.0
        %784 = vmatpush1.msra.mxu0 0.0
        %785 = vmatprep.subr.mxu0 0.0
        %786 = vmatpush1.msra.mxu0 0.0
        %787 = vmatprep.subr.mxu0 0.0
        %788 = vmatpush1.msra.mxu0 0.0
        %789 = vmatprep.subr.mxu0 0.0
        %790 = vmatpush1.msra.mxu0 0.0
        %791 = vmatprep.subr.mxu0 0.0
        %792 = vmatpush1.msra.mxu0 0.0
        %793 = vmatprep.subr.mxu0 0.0
        %794 = vmatpush1.msra.mxu0 0.0
        %795 = vmatprep.subr.mxu0 0.0
        %796 = vmatpush1.msra.mxu0 0.0
        %797 = vmatprep.subr.mxu0 0.0
        %798 = vmatpush1.msra.mxu0 0.0
        %799 = vmatprep.subr.mxu0 0.0
        %800 = vmatpush1.msra.mxu0 0.0
        %801 = vmatprep.subr.mxu0 0.0
        %802 = vmatpush1.msra.mxu0 0.0
        %803 = vmatprep.subr.mxu0 0.0
        %804 = vmatpush1.msra.mxu0 0.0
        %805 = vmatprep.subr.mxu0 0.0
        %806 = vmatpush1.msra.mxu0 0.0
        %807 = vmatprep.subr.mxu0 0.0
        %808 = vmatpush1.msra.mxu0 0.0
        %809 = vmatprep.subr.mxu0 0.0
        %810 = vmatpush1.msra.mxu0 0.0
        %811 = vmatprep.subr.mxu0 0.0
        %812 = vmatpush1.msra.mxu0 0.0
        %813 = vmatprep.subr.mxu0 0.0
        %814 = vmatpush1.msra.mxu0 0.0
        %815 = vmatprep.subr.mxu0 0.0
        %816 = vmatpush1.msra.mxu0 0.0
        %817 = vmatprep.subr.mxu0 0.0
        %818 = vmatpush1.msra.mxu0 0.0
        %819 = vmatprep.subr.mxu0 0.0
        %820 = vmatpush1.msra.mxu0 0.0
        %821 = vmatprep.subr.mxu0 0.0
        %822 = vmatpush1.msra.mxu0 0.0
        %823 = vmatprep.subr.mxu0 0.0
        %824 = vmatpush1.msra.mxu0 0.0
        %825 = vmatprep.subr.mxu0 0.0
        %826 = vmatpush1.msra.mxu0 0.0
        %827 = vmatprep.subr.mxu0 0.0
        %828 = vmatpush1.msra.mxu0 0.0
        %829 = vmatprep.subr.mxu0 0.0
        %830 = vmatpush1.msra.mxu0 0.0
        %831 = vmatprep.subr.mxu0 0.0
        %832 = vmatpush1.msra.mxu0 0.0
        %833 = vmatprep.subr.mxu0 0.0
        %834 = vmatpush1.msra.mxu0 0.0
        %835 = vmatprep.mubr.f32.mxu0 0.0
        %836 = vmatmul.mubr.f32.gmra.mrb[0].mxu0 %v748
        %v837 = vpop.f32.mrb[0].mxu0
        %v838 = vadd.f32 0.0, %v837
        %v839 = vpop.f32.mrb[0].mxu0
        %840 = vmatprep.mubr.f32.mxu0 0.0
        %841 = vmatmul.mubr.f32.gmra.mrb[0].mxu0 %v751
        %v842 = vpop.f32.mrb[0].mxu0
        %v843 = vadd.f32 0.0, %v842
        %v844 = vpop.f32.mrb[0].mxu0
        %845 = vmatprep.mubr.f32.mxu0 0.0
        %846 = vmatmul.mubr.f32.gmra.mrb[0].mxu0 %v754
        %v847 = vpop.f32.mrb[0].mxu0
        %v848 = vadd.f32 0.0, %v847
        %v849 = vpop.f32.mrb[0].mxu0
        %850 = vmatprep.mubr.f32.mxu0 0.0
        %851 = vmatmul.mubr.f32.gmra.mrb[0].mxu0 %v757
        %v852 = vpop.f32.mrb[0].mxu0
        %v853 = vadd.f32 0.0, %v852
        %v854 = vpop.f32.mrb[0].mxu0
        %855 = vmatprep.mubr.f32.mxu0 0.0
        %856 = vmatmul.mubr.f32.gmra.mrb[0].mxu0 %v760
        %v857 = vpop.f32.mrb[0].mxu0
        %v858 = vadd.f32 0.0, %v857
        %v859 = vpop.f32.mrb[0].mxu0
        %860 = vmatprep.mubr.f32.mxu0 0.0
        %861 = vmatmul.mubr.f32.gmra.mrb[0].mxu0 %v763
        %v862 = vpop.f32.mrb[0].mxu0
        %v863 = vadd.f32 0.0, %v862
        %v864 = vpop.f32.mrb[0].mxu0
        %865 = vmatprep.mubr.f32.mxu0 0.0
        %866 = vmatmul.mubr.f32.gmra.mrb[0].mxu0 %v766
        %v867 = vpop.f32.mrb[0].mxu0
        %v868 = vadd.f32 0.0, %v867
        %v869 = vpop.f32.mrb[0].mxu0
        %870 = vmatprep.mubr.f32.mxu0 0.0
        %871 = vmatmul.mubr.f32.gmra.mrb[0].mxu0 %v769
        %v872 = vpop.f32.mrb[0].mxu0
        %v873 = vadd.f32 0.0, %v872
        %v874 = vpop.f32.mrb[0].mxu0
        %875 = vdwg.mxu0
        %v876 = vxor.u32 %v838, 2147483648
        %v877 = vxor.u32 %v843, 2147483648
        %v878 = vxor.u32 %v848, 2147483648
        %v879 = vxor.u32 %v853, 2147483648
        %v880 = vxor.u32 %v858, 2147483648
        %v881 = vxor.u32 %v863, 2147483648
        %v882 = vxor.u32 %v868, 2147483648
        %v883 = vxor.u32 %v873, 2147483648
        %v884 = vmul.f32 %v876, 1.442695
        %v885 = vpow.pop %v884
        %v886 = vmul.f32 %v877, 1.442695
        %v887 = vpow.pop %v886
        %v888 = vmul.f32 %v878, 1.442695
        %v889 = vpow.pop %v888
        %v890 = vmul.f32 %v879, 1.442695
        %v891 = vpow.pop %v890
        %v892 = vmul.f32 %v880, 1.442695
        %v893 = vpow.pop %v892
        %v894 = vmul.f32 %v881, 1.442695
        %v895 = vpow.pop %v894
        %v896 = vmul.f32 %v882, 1.442695
        %v897 = vpow.pop %v896
        %v898 = vmul.f32 %v883, 1.442695
        %v899 = vpow.pop %v898
        %v900 = vadd.f32 %v885, 1.0
        %v901 = vadd.f32 %v887, 1.0
        %v902 = vadd.f32 %v889, 1.0
        %v903 = vadd.f32 %v891, 1.0
        %v904 = vadd.f32 %v893, 1.0
        %v905 = vadd.f32 %v895, 1.0
        %v906 = vadd.f32 %v897, 1.0
        %v907 = vadd.f32 %v899, 1.0
        %v908 = vrcp.pop %v900
        %v909 = vmul.f32 1.0, %v908
        %v910 = vrcp.pop %v901
        %v911 = vmul.f32 1.0, %v910
        %v912 = vrcp.pop %v902
        %v913 = vmul.f32 1.0, %v912
        %v914 = vrcp.pop %v903
        %v915 = vmul.f32 1.0, %v914
        %v916 = vrcp.pop %v904
        %v917 = vmul.f32 1.0, %v916
        %v918 = vrcp.pop %v905
        %v919 = vmul.f32 1.0, %v918
        %v920 = vrcp.pop %v906
        %v921 = vmul.f32 1.0, %v920
        %v922 = vrcp.pop %v907
        %v923 = vmul.f32 1.0, %v922
        %v924 = vld [vmem:[%s6] sm:$0xff]
        %v925 = vld [vmem:[%s6 + $0x8] sm:$0xff]
        %v926 = vld [vmem:[%s6 + $0x10] sm:$0xff]
        %v927 = vld [vmem:[%s6 + $0x18] sm:$0xff]
        %v928 = vld [vmem:[%s6 + $0x20] sm:$0xff]
        %v929 = vld [vmem:[%s6 + $0x28] sm:$0xff]
        %v930 = vld [vmem:[%s6 + $0x30] sm:$0xff]
        %v931 = vld [vmem:[%s6 + $0x38] sm:$0xff]
        %vm932 = vcmask 261120
        %v934 = vsel %vm932, %v724, 0
        %v937 = vsel %vm932, %v726, 0
        %v940 = vsel %vm932, %v728, 0
        %v943 = vsel %vm932, %v730, 0
        %v946 = vsel %vm932, %v732, 0
        %v949 = vsel %vm932, %v734, 0
        %v952 = vsel %vm932, %v736, 0
        %v955 = vsel %vm932, %v738, 0
        %957 = vmatprep.subr.mxu0 %v925
        %958 = vmatpush1.msra.mxu0 %v924
        %959 = vmatprep.subr.mxu0 %v927
        %960 = vmatpush1.msra.mxu0 %v926
        %961 = vmatprep.subr.mxu0 %v929
        %962 = vmatpush1.msra.mxu0 %v928
        %963 = vmatprep.subr.mxu0 %v931
        %964 = vmatpush1.msra.mxu0 %v930
        %965 = vmatprep.subr.mxu0 0.0
        %966 = vmatpush1.msra.mxu0 0.0
        %967 = vmatprep.subr.mxu0 0.0
        %968 = vmatpush1.msra.mxu0 0.0
        %969 = vmatprep.subr.mxu0 0.0
        %970 = vmatpush1.msra.mxu0 0.0
        %971 = vmatprep.subr.mxu0 0.0
        %972 = vmatpush1.msra.mxu0 0.0
        %973 = vmatprep.subr.mxu0 0.0
        %974 = vmatpush1.msra.mxu0 0.0
        %975 = vmatprep.subr.mxu0 0.0
        %976 = vmatpush1.msra.mxu0 0.0
        %977 = vmatprep.subr.mxu0 0.0
        %978 = vmatpush1.msra.mxu0 0.0
        %979 = vmatprep.subr.mxu0 0.0
        %980 = vmatpush1.msra.mxu0 0.0
        %981 = vmatprep.subr.mxu0 0.0
        %982 = vmatpush1.msra.mxu0 0.0
        %983 = vmatprep.subr.mxu0 0.0
        %984 = vmatpush1.msra.mxu0 0.0
        %985 = vmatprep.subr.mxu0 0.0
        %986 = vmatpush1.msra.mxu0 0.0
        %987 = vmatprep.subr.mxu0 0.0
        %988 = vmatpush1.msra.mxu0 0.0
        %989 = vmatprep.subr.mxu0 0.0
        %990 = vmatpush1.msra.mxu0 0.0
        %991 = vmatprep.subr.mxu0 0.0
        %992 = vmatpush1.msra.mxu0 0.0
        %993 = vmatprep.subr.mxu0 0.0
        %994 = vmatpush1.msra.mxu0 0.0
        %995 = vmatprep.subr.mxu0 0.0
        %996 = vmatpush1.msra.mxu0 0.0
        %997 = vmatprep.subr.mxu0 0.0
        %998 = vmatpush1.msra.mxu0 0.0
        %999 = vmatprep.subr.mxu0 0.0
        %1000 = vmatpush1.msra.mxu0 0.0
        %1001 = vmatprep.subr.mxu0 0.0
        %1002 = vmatpush1.msra.mxu0 0.0
        %1003 = vmatprep.subr.mxu0 0.0
        %1004 = vmatpush1.msra.mxu0 0.0
        %1005 = vmatprep.subr.mxu0 0.0
        %1006 = vmatpush1.msra.mxu0 0.0
        %1007 = vmatprep.subr.mxu0 0.0
        %1008 = vmatpush1.msra.mxu0 0.0
        %1009 = vmatprep.subr.mxu0 0.0
        %1010 = vmatpush1.msra.mxu0 0.0
        %1011 = vmatprep.subr.mxu0 0.0
        %1012 = vmatpush1.msra.mxu0 0.0
        %1013 = vmatprep.subr.mxu0 0.0
        %1014 = vmatpush1.msra.mxu0 0.0
        %1015 = vmatprep.subr.mxu0 0.0
        %1016 = vmatpush1.msra.mxu0 0.0
        %1017 = vmatprep.subr.mxu0 0.0
        %1018 = vmatpush1.msra.mxu0 0.0
        %1019 = vmatprep.subr.mxu0 0.0
        %1020 = vmatpush1.msra.mxu0 0.0
        %1021 = vmatprep.mubr.f32.mxu0 0.0
        %1022 = vmatmul.mubr.f32.gmra.mrb[0].mxu0 %v934
        %v1023 = vpop.f32.mrb[0].mxu0
        %v1024 = vadd.f32 0.0, %v1023
        %v1025 = vpop.f32.mrb[0].mxu0
        %v1026 = vadd.f32 0.0, %v1025
        %1027 = vmatprep.mubr.f32.mxu0 0.0
        %1028 = vmatmul.mubr.f32.gmra.mrb[0].mxu0 %v937
        %v1029 = vpop.f32.mrb[0].mxu0
        %v1030 = vadd.f32 0.0, %v1029
        %v1031 = vpop.f32.mrb[0].mxu0
        %v1032 = vadd.f32 0.0, %v1031
        %1033 = vmatprep.mubr.f32.mxu0 0.0
        %1034 = vmatmul.mubr.f32.gmra.mrb[0].mxu0 %v940
        %v1035 = vpop.f32.mrb[0].mxu0
        %v1036 = vadd.f32 0.0, %v1035
        %v1037 = vpop.f32.mrb[0].mxu0
        %v1038 = vadd.f32 0.0, %v1037
        %1039 = vmatprep.mubr.f32.mxu0 0.0
        %1040 = vmatmul.mubr.f32.gmra.mrb[0].mxu0 %v943
        %v1041 = vpop.f32.mrb[0].mxu0
        %v1042 = vadd.f32 0.0, %v1041
        %v1043 = vpop.f32.mrb[0].mxu0
        %v1044 = vadd.f32 0.0, %v1043
        %1045 = vmatprep.mubr.f32.mxu0 0.0
        %1046 = vmatmul.mubr.f32.gmra.mrb[0].mxu0 %v946
        %v1047 = vpop.f32.mrb[0].mxu0
        %v1048 = vadd.f32 0.0, %v1047
        %v1049 = vpop.f32.mrb[0].mxu0
        %v1050 = vadd.f32 0.0, %v1049
        %1051 = vmatprep.mubr.f32.mxu0 0.0
        %1052 = vmatmul.mubr.f32.gmra.mrb[0].mxu0 %v949
        %v1053 = vpop.f32.mrb[0].mxu0
        %v1054 = vadd.f32 0.0, %v1053
        %v1055 = vpop.f32.mrb[0].mxu0
        %v1056 = vadd.f32 0.0, %v1055
        %1057 = vmatprep.mubr.f32.mxu0 0.0
        %1058 = vmatmul.mubr.f32.gmra.mrb[0].mxu0 %v952
        %v1059 = vpop.f32.mrb[0].mxu0
        %v1060 = vadd.f32 0.0, %v1059
        %v1061 = vpop.f32.mrb[0].mxu0
        %v1062 = vadd.f32 0.0, %v1061
        %1063 = vmatprep.mubr.f32.mxu0 0.0
        %1064 = vmatmul.mubr.f32.gmra.mrb[0].mxu0 %v955
        %v1065 = vpop.f32.mrb[0].mxu0
        %v1066 = vadd.f32 0.0, %v1065
        %v1067 = vpop.f32.mrb[0].mxu0
        %v1068 = vadd.f32 0.0, %v1067
        %1069 = vdwg.mxu0
        %v1070 = vld [vmem:[%s7] sm:$0xff]
        %v1071 = vld [vmem:[%s7 + $0x8] sm:$0xff]
        %v1072 = vld [vmem:[%s7 + $0x10] sm:$0xff]
        %v1073 = vld [vmem:[%s7 + $0x18] sm:$0xff]
        %v1074 = vld [vmem:[%s7 + $0x20] sm:$0xff]
        %v1075 = vld [vmem:[%s7 + $0x28] sm:$0xff]
        %v1076 = vld [vmem:[%s7 + $0x30] sm:$0xff]
        %v1077 = vld [vmem:[%s7 + $0x38] sm:$0xff]
        %v1079 = vsel %vm932, %v909, 0
        %v1082 = vsel %vm932, %v911, 0
        %v1085 = vsel %vm932, %v913, 0
        %v1088 = vsel %vm932, %v915, 0
        %v1091 = vsel %vm932, %v917, 0
        %v1094 = vsel %vm932, %v919, 0
        %v1097 = vsel %vm932, %v921, 0
        %v1100 = vsel %vm932, %v923, 0
        %1102 = vmatprep.subr.mxu0 %v1071
        %1103 = vmatpush1.msra.mxu0 %v1070
        %1104 = vmatprep.subr.mxu0 %v1073
        %1105 = vmatpush1.msra.mxu0 %v1072
        %1106 = vmatprep.subr.mxu0 %v1075
        %1107 = vmatpush1.msra.mxu0 %v1074
        %1108 = vmatprep.subr.mxu0 %v1077
        %1109 = vmatpush1.msra.mxu0 %v1076
        %1110 = vmatprep.subr.mxu0 0.0
        %1111 = vmatpush1.msra.mxu0 0.0
        %1112 = vmatprep.subr.mxu0 0.0
        %1113 = vmatpush1.msra.mxu0 0.0
        %1114 = vmatprep.subr.mxu0 0.0
        %1115 = vmatpush1.msra.mxu0 0.0
        %1116 = vmatprep.subr.mxu0 0.0
        %1117 = vmatpush1.msra.mxu0 0.0
        %1118 = vmatprep.subr.mxu0 0.0
        %1119 = vmatpush1.msra.mxu0 0.0
        %1120 = vmatprep.subr.mxu0 0.0
        %1121 = vmatpush1.msra.mxu0 0.0
        %1122 = vmatprep.subr.mxu0 0.0
        %1123 = vmatpush1.msra.mxu0 0.0
        %1124 = vmatprep.subr.mxu0 0.0
        %1125 = vmatpush1.msra.mxu0 0.0
        %1126 = vmatprep.subr.mxu0 0.0
        %1127 = vmatpush1.msra.mxu0 0.0
        %1128 = vmatprep.subr.mxu0 0.0
        %1129 = vmatpush1.msra.mxu0 0.0
        %1130 = vmatprep.subr.mxu0 0.0
        %1131 = vmatpush1.msra.mxu0 0.0
        %1132 = vmatprep.subr.mxu0 0.0
        %1133 = vmatpush1.msra.mxu0 0.0
        %1134 = vmatprep.subr.mxu0 0.0
        %1135 = vmatpush1.msra.mxu0 0.0
        %1136 = vmatprep.subr.mxu0 0.0
        %1137 = vmatpush1.msra.mxu0 0.0
        %1138 = vmatprep.subr.mxu0 0.0
        %1139 = vmatpush1.msra.mxu0 0.0
        %1140 = vmatprep.subr.mxu0 0.0
        %1141 = vmatpush1.msra.mxu0 0.0
        %1142 = vmatprep.subr.mxu0 0.0
        %1143 = vmatpush1.msra.mxu0 0.0
        %1144 = vmatprep.subr.mxu0 0.0
        %1145 = vmatpush1.msra.mxu0 0.0
        %1146 = vmatprep.subr.mxu0 0.0
        %1147 = vmatpush1.msra.mxu0 0.0
        %1148 = vmatprep.subr.mxu0 0.0
        %1149 = vmatpush1.msra.mxu0 0.0
        %1150 = vmatprep.subr.mxu0 0.0
        %1151 = vmatpush1.msra.mxu0 0.0
        %1152 = vmatprep.subr.mxu0 0.0
        %1153 = vmatpush1.msra.mxu0 0.0
        %1154 = vmatprep.subr.mxu0 0.0
        %1155 = vmatpush1.msra.mxu0 0.0
        %1156 = vmatprep.subr.mxu0 0.0
        %1157 = vmatpush1.msra.mxu0 0.0
        %1158 = vmatprep.subr.mxu0 0.0
        %1159 = vmatpush1.msra.mxu0 0.0
        %1160 = vmatprep.subr.mxu0 0.0
        %1161 = vmatpush1.msra.mxu0 0.0
        %1162 = vmatprep.subr.mxu0 0.0
        %1163 = vmatpush1.msra.mxu0 0.0
        %1164 = vmatprep.subr.mxu0 0.0
        %1165 = vmatpush1.msra.mxu0 0.0
        %1166 = vmatprep.mubr.f32.mxu0 0.0
        %1167 = vmatmul.mubr.f32.gmra.mrb[0].mxu0 %v1079
        %v1168 = vpop.f32.mrb[0].mxu0
        %v1169 = vadd.f32 0.0, %v1168
        %v1170 = vpop.f32.mrb[0].mxu0
        %v1171 = vadd.f32 0.0, %v1170
        %1172 = vmatprep.mubr.f32.mxu0 0.0
        %1173 = vmatmul.mubr.f32.gmra.mrb[0].mxu0 %v1082
        %v1174 = vpop.f32.mrb[0].mxu0
        %v1175 = vadd.f32 0.0, %v1174
        %v1176 = vpop.f32.mrb[0].mxu0
        %v1177 = vadd.f32 0.0, %v1176
        %1178 = vmatprep.mubr.f32.mxu0 0.0
        %1179 = vmatmul.mubr.f32.gmra.mrb[0].mxu0 %v1085
        %v1180 = vpop.f32.mrb[0].mxu0
        %v1181 = vadd.f32 0.0, %v1180
        %v1182 = vpop.f32.mrb[0].mxu0
        %v1183 = vadd.f32 0.0, %v1182
        %1184 = vmatprep.mubr.f32.mxu0 0.0
        %1185 = vmatmul.mubr.f32.gmra.mrb[0].mxu0 %v1088
        %v1186 = vpop.f32.mrb[0].mxu0
        %v1187 = vadd.f32 0.0, %v1186
        %v1188 = vpop.f32.mrb[0].mxu0
        %v1189 = vadd.f32 0.0, %v1188
        %1190 = vmatprep.mubr.f32.mxu0 0.0
        %1191 = vmatmul.mubr.f32.gmra.mrb[0].mxu0 %v1091
        %v1192 = vpop.f32.mrb[0].mxu0
        %v1193 = vadd.f32 0.0, %v1192
        %v1194 = vpop.f32.mrb[0].mxu0
        %v1195 = vadd.f32 0.0, %v1194
        %1196 = vmatprep.mubr.f32.mxu0 0.0
        %1197 = vmatmul.mubr.f32.gmra.mrb[0].mxu0 %v1094
        %v1198 = vpop.f32.mrb[0].mxu0
        %v1199 = vadd.f32 0.0, %v1198
        %v1200 = vpop.f32.mrb[0].mxu0
        %v1201 = vadd.f32 0.0, %v1200
        %1202 = vmatprep.mubr.f32.mxu0 0.0
        %1203 = vmatmul.mubr.f32.gmra.mrb[0].mxu0 %v1097
        %v1204 = vpop.f32.mrb[0].mxu0
        %v1205 = vadd.f32 0.0, %v1204
        %v1206 = vpop.f32.mrb[0].mxu0
        %v1207 = vadd.f32 0.0, %v1206
        %1208 = vmatprep.mubr.f32.mxu0 0.0
        %1209 = vmatmul.mubr.f32.gmra.mrb[0].mxu0 %v1100
        %v1210 = vpop.f32.mrb[0].mxu0
        %v1211 = vadd.f32 0.0, %v1210
        %v1212 = vpop.f32.mrb[0].mxu0
        %v1213 = vadd.f32 0.0, %v1212
        %1214 = vdwg.mxu0
        %v1215 = vmul.f32 %v310, %v1024
        %v1216 = vmul.f32 %v311, %v1026
        %v1217 = vmul.f32 %v312, %v1030
        %v1218 = vmul.f32 %v313, %v1032
        %v1219 = vmul.f32 %v314, %v1036
        %v1220 = vmul.f32 %v315, %v1038
        %v1221 = vmul.f32 %v316, %v1042
        %v1222 = vmul.f32 %v317, %v1044
        %v1223 = vmul.f32 %v318, %v1048
        %v1224 = vmul.f32 %v319, %v1050
        %v1225 = vmul.f32 %v320, %v1054
        %v1226 = vmul.f32 %v321, %v1056
        %v1227 = vmul.f32 %v322, %v1060
        %v1228 = vmul.f32 %v323, %v1062
        %v1229 = vmul.f32 %v324, %v1066
        %v1230 = vmul.f32 %v325, %v1068
        %v1231 = vmul.f32 %v1215, %v1169
        %v1232 = vmul.f32 %v1216, %v1171
        %v1233 = vmul.f32 %v1217, %v1175
        %v1234 = vmul.f32 %v1218, %v1177
        %v1235 = vmul.f32 %v1219, %v1181
        %v1236 = vmul.f32 %v1220, %v1183
        %v1237 = vmul.f32 %v1221, %v1187
        %v1238 = vmul.f32 %v1222, %v1189
        %v1239 = vmul.f32 %v1223, %v1193
        %v1240 = vmul.f32 %v1224, %v1195
        %v1241 = vmul.f32 %v1225, %v1199
        %v1242 = vmul.f32 %v1226, %v1201
        %v1243 = vmul.f32 %v1227, %v1205
        %v1244 = vmul.f32 %v1228, %v1207
        %v1245 = vmul.f32 %v1229, %v1211
        %v1246 = vmul.f32 %v1230, %v1213
        %1247 = vst [vmem:[%s301] sm:$0xff] %v1231
        %1248 = vst [vmem:[%s301 + $0x8] sm:$0xff] %v1232
        %1249 = vst [vmem:[%s301 + $0x10] sm:$0xff] %v1233
        %1250 = vst [vmem:[%s301 + $0x18] sm:$0xff] %v1234
        %1251 = vst [vmem:[%s301 + $0x20] sm:$0xff] %v1235
        %1252 = vst [vmem:[%s301 + $0x28] sm:$0xff] %v1236
        %1253 = vst [vmem:[%s301 + $0x30] sm:$0xff] %v1237
        %1254 = vst [vmem:[%s301 + $0x38] sm:$0xff] %v1238
        %1255 = vst [vmem:[%s301 + $0x40] sm:$0xff] %v1239
        %1256 = vst [vmem:[%s301 + $0x48] sm:$0xff] %v1240
        %1257 = vst [vmem:[%s301 + $0x50] sm:$0xff] %v1241
        %1258 = vst [vmem:[%s301 + $0x58] sm:$0xff] %v1242
        %1259 = vst [vmem:[%s301 + $0x60] sm:$0xff] %v1243
        %1260 = vst [vmem:[%s301 + $0x68] sm:$0xff] %v1244
        %1261 = vst [vmem:[%s301 + $0x70] sm:$0xff] %v1245
        %1262 = vst [vmem:[%s301 + $0x78] sm:$0xff] %v1246
        %s1263 = sand.u32 %s203, 1
        %s1264 = scalar_lea.sflag [#allocation3], %s1263
        %s1265 = sand.u32 %s203, 1
        %s1266 = smul.addr %s1265, 128
        %s1267 = scalar_lea.vmem [#allocation2], %s1266
        // Predicated region
        $region53: #{tpu_custom_call.1} parent=51 // pred_check
          %p1268 = pneg %p213
        $region54: #{tpu_custom_call.1} parent=51 // pred_check_branch
          %1270 = sbr.rel (%p1268) target = $region56
        $region55: #{tpu_custom_call.1} parent=51 // pred_region
          %s1271 = smul.u32 8, %s22
          %s1273 = ssub.s32 2048, 2048
          %1274 = vsyncadd %s1264, %s1273
          %s1275 = smul.addr %s1271, 2
          %s1276 = smul.addr %s1275, 128
          %s1277 = scalar_lea.hbm %s8, %s1276
          %s1278 = sshll.u32 %s1267, 4
          %s1279 = int_to_ptr.vmem [resolvable:$true] %s1278
          %1284 = dma.vmem_to_hbm [thread:$0]  %s1279, 2048, %s1277, %s1264, 256, 256, 16
        $region56: #{tpu_custom_call.1} parent=51 // pred_fallthru
          _
      $region52: #{tpu_custom_call.1} parent=5 // pred_fallthru
        _
      %p1285 = scmp.le.s32.totalorder 2, %s17
      // Predicated region
      $region57: #{tpu_custom_call.1} parent=5 // pred_check
        %p1286 = pneg %p1285
      $region58: #{tpu_custom_call.1} parent=5 // pred_check_branch
        %1288 = sbr.rel (%p1286) target = $region60
      $region59: #{tpu_custom_call.1} parent=5 // pred_region
        %s1289 = ssub.s32 %s17, 2
        // Predicated region
        $region61: #{tpu_custom_call.1} parent=59 // pred_check
          %p1290 = pneg %p219
        $region62: #{tpu_custom_call.1} parent=59 // pred_check_branch
          %1292 = sbr.rel (%p1290) target = $region64
        $region63: #{tpu_custom_call.1} parent=59 // pred_region
          %s1293 = sand.u32 %s204, 1
          %s1294 = scalar_lea.sflag [#allocation3], %s1293
          %s1295 = sand.u32 %s204, 1
          %s1296 = smul.addr %s1295, 128
          %s1297 = scalar_lea.vmem [#allocation2], %s1296
          %1298 = dma.done %s1294, 2048
        $region64: #{tpu_custom_call.1} parent=59 // pred_fallthru
          _
      $region60: #{tpu_custom_call.1} parent=5 // pred_fallthru
        _
    $region6: #{tpu_custom_call.1} parent=1 // loop_footer
      %s21 = sadd.s32 1, %s17
    $region7: #{tpu_custom_call.1} parent=1 // loop_footer_branch
      %16 = sbr.rel target = $region3
    $region8: #{tpu_custom_call.1} parent=1 // loop_exit
      _
    %1299 = vsyncpa [#allocation3], 1
    %s1300 = scalar_lea.sflag [#allocation3], 1
    %1301 = vsyncpa %s1300, 1

</llo_original>
